<compile_context>
chip_gen: v6e
topology: v6e:2x2x1
jax: 0.10.0
libtpu: 0.0.40
codegen_flags: <defaults>
</compile_context>

<pallas_src>
import functools

import jax
import jax.numpy as jnp
from jax.experimental import pallas as pl
from jax.experimental.pallas import tpu as pltpu

T_PARAM = 100
F_PARAM = 27


def specaug_kernel(aux_ref, b_ref, x_ref, o_ref, *, b_tile):
    """Process one (b_tile, l_chunk) tile of the flattened (N_pad, L_pad) input.

    aux_ref : (2, l_chunk) int32. Row 0 = flat index t*F+f of this L-chunk,
              row 1 = frequency index (flat % F). Precomputed in the wrapper so
              no vector integer modulo is needed in-kernel.
    b_ref   : (N_pad, 4) int32, resident (constant index_map). Columns are
              (t_lo*F, t_len*F, f_lo, f_len): in flat-index space the time band
              is one contiguous range; the frequency band is periodic in fidx.
    """
    ib = pl.program_id(1)                               # batch-block index
    row0 = pl.multiple_of(ib * b_tile, b_tile)
    b = b_ref[pl.ds(row0, b_tile), :]                   # (b_tile, 4)
    t_lo, t_len = b[:, 0:1], b[:, 1:2]
    f_lo, f_len = b[:, 2:3], b[:, 3:4]

    idx = aux_ref[0:1, :]                               # (1, l_chunk)
    fidx = aux_ref[1:2, :]                              # (1, l_chunk)

    # Unsigned range trick: lo <= a < lo+len  <=>  (a - lo) u< len.
    in_t = (idx - t_lo).astype(jnp.uint32) < t_len.astype(jnp.uint32)
    in_f = (fidx - f_lo).astype(jnp.uint32) < f_len.astype(jnp.uint32)
    zero = in_t | in_f
    o_ref[...] = jnp.where(zero, jnp.zeros((), x_ref.dtype), x_ref[...])


def _round_up(a, m):
    return -(-a // m) * m


def _plan_tiles(n, l, itemsize, target_bytes=4 << 20):
    """Pick (b_tile, l_chunk, n_pad, l_pad).

    * ~4 MiB byte target per block (amortizes the ~0.35 us per-step overhead
      at v7x bandwidth; also fine for v5e/v6e).
    * dtype-aware sublane granularity: 8 rows f32, 16 bf16, 32 int8/fp8.
    * l_chunk always a multiple of 128 (lane-dense full `vst` stores).
    * guarantee >= 2 grid steps when possible (megacore sharding + pipelining).
    """
    sub = max(8, 32 // itemsize)
    l_full = _round_up(l, 128)
    n_full = _round_up(n, sub)

    rows_in_target = (target_bytes // (l_full * itemsize)) // sub * sub
    if rows_in_target >= sub:
        # A full-L stripe fits the target: fill the block with batch rows.
        l_chunk = l_full
        n_blk = -(-n_full // min(n_full, rows_in_target))
        b_tile = _round_up(-(-n_full // n_blk), sub)
    else:
        # Even `sub` rows of the full L exceed the target: chunk L.
        b_tile = sub
        l_cap = max(128, (target_bytes // (sub * itemsize)) // 128 * 128)
        n_lblk = -(-l_full // l_cap)
        l_chunk = _round_up(-(-l_full // n_lblk), 128)

    def steps(bt, lc):
        return (_round_up(n, bt) // bt) * (_round_up(l, lc) // lc)

    while steps(b_tile, l_chunk) < 2:
        if b_tile % (2 * sub) == 0:          # prefer splitting batch rows
            b_tile //= 2
            continue
        new_lc = _round_up(-(-l_chunk // 2), 128)
        if new_lc < l_chunk:                 # then split the lane chunk
            l_chunk = new_lc
            continue
        break                                # tiny problem; one step is fine

    return b_tile, l_chunk, _round_up(n, b_tile), _round_up(l, l_chunk)


def spec_augment(x, bounds, training=True):
    """x: (N, T, F) float; bounds: (N, 4) int32 = (t_min, t_max, f_min, f_max)."""
    if not training:
        return x
    N, T, F = x.shape
    L = T * F
    itemsize = jnp.dtype(x.dtype).itemsize
    b_tile, l_chunk, n_pad, l_pad = _plan_tiles(N, L, itemsize)

    x2 = x.reshape(N, L)
    if n_pad != N or l_pad != L:
        x2 = jnp.pad(x2, ((0, n_pad - N), (0, l_pad - L)))

    # Bounds -> (t_lo, t_len, f_lo, f_len), time band rescaled to flat indices.
    t_min, t_max = bounds[:, 0], bounds[:, 1]
    f_min, f_max = bounds[:, 2], bounds[:, 3]
    kb = jnp.stack([t_min * F, (t_max - t_min) * F, f_min, f_max - f_min],
                   axis=1).astype(jnp.int32)
    if n_pad != N:
        kb = jnp.pad(kb, ((0, n_pad - N), (0, 0)))   # zero-length masks for pads

    # Flat index + frequency index rows (computed by XLA, not in-kernel).
    flat = jnp.arange(l_pad, dtype=jnp.int32)
    aux = jnp.stack([flat, flat % F], axis=0)        # (2, l_pad)

    grid = (l_pad // l_chunk, n_pad // b_tile)       # L chunks outer (rarely change)
    block_bytes = b_tile * l_chunk * itemsize
    vmem_limit = int(min(48 << 20, max(32 << 20, 4 * block_bytes + (8 << 20))))

    out = pl.pallas_call(
        functools.partial(specaug_kernel, b_tile=b_tile),
        out_shape=jax.ShapeDtypeStruct((n_pad, l_pad), x.dtype),
        grid_spec=pltpu.PrefetchScalarGridSpec(
            num_scalar_prefetch=0,
            grid=grid,
            in_specs=[
                pl.BlockSpec((2, l_chunk), lambda jl, ib: (0, jl)),      # aux rows
                pl.BlockSpec((n_pad, 4), lambda jl, ib: (0, 0)),         # resident bounds
                pl.BlockSpec((b_tile, l_chunk), lambda jl, ib: (ib, jl)),
            ],
            out_specs=pl.BlockSpec((b_tile, l_chunk), lambda jl, ib: (ib, jl)),
        ),
        compiler_params=pltpu.CompilerParams(
            dimension_semantics=("parallel", "parallel"),
            vmem_limit_bytes=vmem_limit),
    )(aux, kb, x2)

    return out[:N, :L].reshape(N, T, F)


def sample_mask_bounds(key, N, T, F):
    """JAX replica of the numpy sampling in SpecAugment.forward (train path).

    Lengths are clamped to the axis size so shapes with T < T_PARAM or
    F < F_PARAM stay valid.
    """
    u = jax.random.uniform(key, (N, 4), dtype=jnp.float32)
    f_len = jnp.minimum((u[:, 0] * F_PARAM).astype(jnp.int32), F)
    f_min = ((F - f_len).astype(jnp.float32) * u[:, 1]).astype(jnp.int32)
    f_max = f_min + f_len
    t_len = jnp.minimum((u[:, 2] * T_PARAM).astype(jnp.int32), T)
    t_min = ((T - t_len).astype(jnp.float32) * u[:, 3]).astype(jnp.int32)
    t_max = t_min + t_len
    return jnp.stack([t_min, t_max, f_min, f_max], axis=1).astype(jnp.int32)


if __name__ == "__main__":
    import numpy as np

    key = jax.random.PRNGKey(0)
    cases = [
        ((2, 128, 64), jnp.float32),    # lane-aligned T*F, power-of-two F
        ((3, 50, 27), jnp.float32),     # ragged: N pad, L pad, non-pow2 F
        ((2, 64, 80), jnp.bfloat16),    # packed dtype -> 16-row sublane tile
    ]
    for shape, dtype in cases:
        N, T, F = shape
        key, kx, kb = jax.random.split(key, 3)
        x = jax.random.normal(kx, shape, dtype=jnp.float32).astype(dtype)
        bounds = sample_mask_bounds(kb, N, T, F)

        out = jax.block_until_ready(spec_augment(x, bounds, training=True))

        # Reference check (same semantics as the torch loop).
        xf = np.asarray(x).astype(np.float32)
        bb = np.asarray(bounds)
        ref = xf.copy()
        for i in range(N):
            t_min, t_max, f_min, f_max = (int(v) for v in bb[i])
            m = np.ones((T, F), dtype=np.float32)
            m[t_min:t_max, :] = 0.0
            m[:, f_min:f_max] = 0.0
            ref[i] = xf[i] * m
        np.testing.assert_allclose(np.asarray(out).astype(np.float32), ref,
                                   rtol=0, atol=0)

        # Eval path: identity (the `else` branch of forward).
        ev = jax.block_until_ready(spec_augment(x, bounds, training=False))
        np.testing.assert_allclose(np.asarray(ev).astype(np.float32), xf)

    print("KERNEL_OK")
</pallas_src>

<mosaic_0001>
module attributes {stable_mosaic.version = 11 : i64} {
  func.func @specaug_kernel(%arg0: i32, %arg1: i32, %arg2: memref<2x4096xi32, #tpu.memory_space<vmem>>, %arg3: memref<8x4xi32, #tpu.memory_space<vmem>>, %arg4: memref<8x4096xf32, #tpu.memory_space<vmem>>, %arg5: memref<8x4096xf32, #tpu.memory_space<vmem>>) attributes {dimension_semantics = [#tpu.dimension_semantics<parallel>, #tpu.dimension_semantics<parallel>], iteration_bounds = array<i64: 2, 1>, scalar_prefetch = 0 : i64, scratch_operands = 0 : i64, tpu.core_type = #tpu.core_type<tc>, window_params = [{transform_indices = @transform_0, window_bounds = array<i64: 2, 4096>}, {pipeline_mode = #tpu.pipeline_mode<synchronous>, transform_indices = @transform_1, window_bounds = array<i64: 8, 4>}, {transform_indices = @transform_2, window_bounds = array<i64: 8, 4096>}, {transform_indices = @transform_3, window_bounds = array<i64: 8, 4096>}]} {
    %c8_i32 = arith.constant 8 : i32
    %0 = arith.muli %arg1, %c8_i32 : i32
    %1 = tpu.assume_multiple %0, 8 : i32
    %2 = arith.index_cast %1 : i32 to index
    %c0 = arith.constant 0 : index
    %3 = vector.load %arg3[%2, %c0] : memref<8x4xi32, #tpu.memory_space<vmem>>, vector<8x4xi32>
    %4 = vector.extract_strided_slice %3 {offsets = [0, 0], sizes = [8, 1], strides = [1, 1]} : vector<8x4xi32> to vector<8x1xi32>
    %5 = vector.extract_strided_slice %3 {offsets = [0, 1], sizes = [8, 1], strides = [1, 1]} : vector<8x4xi32> to vector<8x1xi32>
    %6 = vector.extract_strided_slice %3 {offsets = [0, 2], sizes = [8, 1], strides = [1, 1]} : vector<8x4xi32> to vector<8x1xi32>
    %7 = vector.extract_strided_slice %3 {offsets = [0, 3], sizes = [8, 1], strides = [1, 1]} : vector<8x4xi32> to vector<8x1xi32>
    %c0_0 = arith.constant 0 : index
    %c0_1 = arith.constant 0 : index
    %8 = vector.load %arg2[%c0_0, %c0_1] : memref<2x4096xi32, #tpu.memory_space<vmem>>, vector<1x4096xi32>
    %c1 = arith.constant 1 : index
    %c0_2 = arith.constant 0 : index
    %9 = vector.load %arg2[%c1, %c0_2] : memref<2x4096xi32, #tpu.memory_space<vmem>>, vector<1x4096xi32>
    %10 = vector.broadcast %8 : vector<1x4096xi32> to vector<8x4096xi32>
    %11 = vector.broadcast %4 : vector<8x1xi32> to vector<8x4096xi32>
    %12 = arith.subi %10, %11 : vector<8x4096xi32>
    %13 = vector.broadcast %5 : vector<8x1xi32> to vector<8x4096xi32>
    %14 = arith.cmpi ult, %12, %13 : vector<8x4096xi32>
    %15 = vector.broadcast %9 : vector<1x4096xi32> to vector<8x4096xi32>
    %16 = vector.broadcast %6 : vector<8x1xi32> to vector<8x4096xi32>
    %17 = arith.subi %15, %16 : vector<8x4096xi32>
    %18 = vector.broadcast %7 : vector<8x1xi32> to vector<8x4096xi32>
    %19 = arith.cmpi ult, %17, %18 : vector<8x4096xi32>
    %20 = arith.ori %14, %19 : vector<8x4096xi1>
    %c0_3 = arith.constant 0 : index
    %c0_4 = arith.constant 0 : index
    %21 = vector.load %arg4[%c0_3, %c0_4] : memref<8x4096xf32, #tpu.memory_space<vmem>>, vector<8x4096xf32>
    %cst = arith.constant 0.000000e+00 : f32
    %22 = vector.broadcast %cst : f32 to vector<8x4096xf32>
    %23 = arith.select %20, %22, %21 : vector<8x4096xi1>, vector<8x4096xf32>
    %c0_5 = arith.constant 0 : index
    %c0_6 = arith.constant 0 : index
    %24 = vector.load %arg5[%c0_5, %c0_6] : memref<8x4096xf32, #tpu.memory_space<vmem>>, vector<8x4096xf32>
    tpu.vector_store %arg5[%c0_5, %c0_6], %23 {strides = array<i32>} : memref<8x4096xf32, #tpu.memory_space<vmem>>, vector<8x4096xf32>,
    return
  }
  func.func @transform_0(%arg0: i32, %arg1: i32) -> (i32, i32) {
    %c0_i32 = arith.constant 0 : i32
    %c0_i32_0 = arith.constant 0 : i32
    return %c0_i32, %arg0 : i32, i32
  }
  func.func @transform_1(%arg0: i32, %arg1: i32) -> (i32, i32) {
    %c0_i32 = arith.constant 0 : i32
    %c0_i32_0 = arith.constant 0 : i32
    %c0_i32_1 = arith.constant 0 : i32
    return %c0_i32, %c0_i32_0 : i32, i32
  }
  func.func @transform_2(%arg0: i32, %arg1: i32) -> (i32, i32) {
    %c0_i32 = arith.constant 0 : i32
    return %arg1, %arg0 : i32, i32
  }
  func.func @transform_3(%arg0: i32, %arg1: i32) -> (i32, i32) {
    %c0_i32 = arith.constant 0 : i32
    return %arg1, %arg0 : i32, i32
  }
}

</mosaic_0001>

<llo_original>
// kernel: tpu_custom_call.1
$region0: #{tpu_custom_call.1}
  #allocation0 [shape = 'u32[]', space=smem, size = 0x4, offset = 0x4, fixed_abs, tag = 'smem constant byte address 0x4 - core index']
  #allocation1 [shape = 'u32[144,128]{1,0:T(1,128)}', space=vmem, size = 0x12000, scoped, tag = 'internal scratch']
  %s0 = inlined_call_operand.hbm [shape: s32[2,8192], index: 0, kind: input, shape index: {}]
  %s1 = inlined_call_operand.vmem [shape: s32[8,4], index: 1, kind: input, shape index: {}]
  %s2 = inlined_call_operand.hbm [shape: f32[8,8192], index: 2, kind: input, shape index: {}]
  %s3 = inlined_call_operand.hbm [shape: f32[8,8192], index: 3, kind: output, shape index: {}]
  %s4 = sld [smem:[#allocation0]]
  $region53: #{tpu_custom_call.1} parent=0
    _
  %s6 = ssub.s32 1, %s4
  %s7 = scalar_select 0, %s6, %s4
  $region1: #{tpu_custom_call.1} parent=0
    #allocation2 [shape = 'u8[65536]{0}', space=vmem, size = 0x10000, scoped, tag = 'input window, operand 0']
    #allocation3 [shape = 's32[2]{0}', space=sflag, size = 0x8, scoped, tag = 'scoped memory for tpu_custom_call.1']
    #allocation4 [shape = 's32[2]{0}', space=sflag, size = 0x8, scoped, tag = 'scoped memory for tpu_custom_call.1']
    #allocation5 [shape = 'u8[262144]{0}', space=vmem, size = 0x40000, scoped, tag = 'input window, operand 2']
    #allocation6 [shape = 's32[2]{0}', space=sflag, size = 0x8, scoped, tag = 'scoped memory for tpu_custom_call.1']
    #allocation7 [shape = 'u8[262144]{0}', space=vmem, size = 0x40000, scoped, tag = 'output window, operand 0']
    %8 = vsyncpa [#allocation3], 0
    %s9 = scalar_lea.sflag [#allocation3], 1
    %10 = vsyncpa %s9, 0
    %11 = vsyncpa [#allocation6], 0
    %s12 = scalar_lea.sflag [#allocation6], 1
    %13 = vsyncpa %s12, 0
    %14 = vsyncpa [#allocation4], 0
    %s15 = scalar_lea.sflag [#allocation4], 1
    %16 = vsyncpa %s15, 0
    loop: start=0, step=1, limit=4
    $region2: #{tpu_custom_call.1} parent=1 // loop_pre_header
      _
    $region3: #{tpu_custom_call.1} parent=1 // loop_header
      %s18 = sphi 0, %s22
      %p19 = scmp.ge.s32.totalorder %s18, 4
      %s25 = sphi 0, %s37
      %s26 = sphi 0, %s33
      %s27 = sphi 0, %s25
      %s28 = sphi 0, %s26
      %s29 = sphi 0, %s27
      %s30 = sphi 0, %s28
      %s40 = sphi 0, %s42
      %s43 = sphi 0, %s40
      %s44 = sphi 0, %s43
      %s60 = sphi 0, %s44
      %s64 = sphi 0, %s64
      %s66 = sphi 0, %s64
      %s67 = sphi 0, %s66
      %s81 = sphi 0, %s67
      %s89 = sphi 0, %s91
      %s92 = sphi 0, %s89
      %s93 = sphi 0, %s92
      %s109 = sphi 0, %s93
      %s117 = sphi 0, %s119
      %s120 = sphi 0, %s117
      %s121 = sphi 0, %s120
      %s137 = sphi 0, %s121
    $region4: #{tpu_custom_call.1} parent=1 // loop_header_branch
      %21 = sbr.rel (%p19) target = $region8
    $region5: #{tpu_custom_call.1} parent=1 // loop_body
      %s23 = ssub.s32 %s18, 1
      %s24 = ssub.s32 %s18, 2
      %s31 = sadd.s32 1, %s26
      %p32 = scmp.ge.s32.totalorder %s31, 1
      %s33 = scalar_select %p32, 0, %s31
      %s34 = sadd.s32 1, %s25
      %s35 = scalar_select %p32, %s34, %s25
      %p36 = scmp.ge.s32.totalorder %s35, 2
      %s37 = scalar_select %p36, 0, %s35
      %s38 = ssub.s32 %s25, %s37
      %p39 = scmp.eq.s32.totalorder %s38, 0
      %s41 = sadd.s32 %s40, 1
      %s42 = scalar_select %p39, %s40, %s41
      %p45 = pneg %p39
      %p46 = scmp.eq.s32.totalorder %s18, 1
      %p47 = por %p45, %p46
      %p48 = scmp.ne.s32.totalorder %s40, %s43
      %p49 = scmp.eq.s32.totalorder %s18, 0
      %p50 = por %p48, %p49
      %p51 = scmp.ne.s32.totalorder %s40, %s43
      %p52 = scmp.eq.s32.totalorder %s23, 1
      %p53 = por %p51, %p52
      %p54 = scmp.ne.s32.totalorder %s43, %s44
      %p55 = scmp.eq.s32.totalorder %s23, 0
      %p56 = por %p54, %p55
      %p57 = scmp.ne.s32.totalorder %s43, %s44
      %p58 = scmp.eq.s32.totalorder %s24, 1
      %p59 = por %p57, %p58
      %p61 = scmp.ne.s32.totalorder %s44, %s60
      %p62 = scmp.eq.s32.totalorder %s24, 0
      %p63 = por %p61, %p62
      %s65 = sadd.s32 %s64, 1
      %p68 = scmp.eq.s32.totalorder %s18, 1
      %p69 = scmp.ne.s32.totalorder %s64, %s66
      %p70 = scmp.eq.s32.totalorder %s18, 0
      %p71 = por %p69, %p70
      %p72 = scmp.ne.s32.totalorder %s64, %s66
      %p73 = scmp.eq.s32.totalorder %s23, 1
      %p74 = por %p72, %p73
      %p75 = scmp.ne.s32.totalorder %s66, %s67
      %p76 = scmp.eq.s32.totalorder %s23, 0
      %p77 = por %p75, %p76
      %p78 = scmp.ne.s32.totalorder %s66, %s67
      %p79 = scmp.eq.s32.totalorder %s24, 1
      %p80 = por %p78, %p79
      %p82 = scmp.ne.s32.totalorder %s67, %s81
      %p83 = scmp.eq.s32.totalorder %s24, 0
      %p84 = por %p82, %p83
      %s85 = ssub.s32 %s26, %s33
      %s86 = ssub.s32 %s25, %s37
      %s87 = sor.u32 %s85, %s86
      %p88 = scmp.eq.s32.totalorder %s87, 0
      %s90 = sadd.s32 %s89, 1
      %s91 = scalar_select %p88, %s89, %s90
      %p94 = pneg %p88
      %p95 = scmp.eq.s32.totalorder %s18, 1
      %p96 = por %p94, %p95
      %p97 = scmp.ne.s32.totalorder %s89, %s92
      %p98 = scmp.eq.s32.totalorder %s18, 0
      %p99 = por %p97, %p98
      %p100 = scmp.ne.s32.totalorder %s89, %s92
      %p101 = scmp.eq.s32.totalorder %s23, 1
      %p102 = por %p100, %p101
      %p103 = scmp.ne.s32.totalorder %s92, %s93
      %p104 = scmp.eq.s32.totalorder %s23, 0
      %p105 = por %p103, %p104
      %p106 = scmp.ne.s32.totalorder %s92, %s93
      %p107 = scmp.eq.s32.totalorder %s24, 1
      %p108 = por %p106, %p107
      %p110 = scmp.ne.s32.totalorder %s93, %s109
      %p111 = scmp.eq.s32.totalorder %s24, 0
      %p112 = por %p110, %p111
      %s113 = ssub.s32 %s26, %s33
      %s114 = ssub.s32 %s25, %s37
      %s115 = sor.u32 %s113, %s114
      %p116 = scmp.eq.s32.totalorder %s115, 0
      %s118 = sadd.s32 %s117, 1
      %s119 = scalar_select %p116, %s117, %s118
      %p122 = pneg %p116
      %p123 = scmp.eq.s32.totalorder %s18, 1
      %p124 = por %p122, %p123
      %p125 = scmp.ne.s32.totalorder %s117, %s120
      %p126 = scmp.eq.s32.totalorder %s18, 0
      %p127 = por %p125, %p126
      %p128 = scmp.ne.s32.totalorder %s117, %s120
      %p129 = scmp.eq.s32.totalorder %s23, 1
      %p130 = por %p128, %p129
      %p131 = scmp.ne.s32.totalorder %s120, %s121
      %p132 = scmp.eq.s32.totalorder %s23, 0
      %p133 = por %p131, %p132
      %p134 = scmp.ne.s32.totalorder %s120, %s121
      %p135 = scmp.eq.s32.totalorder %s24, 1
      %p136 = por %p134, %p135
      %p138 = scmp.ne.s32.totalorder %s121, %s137
      %p139 = scmp.eq.s32.totalorder %s24, 0
      %p140 = por %p138, %p139
      %p141 = scmp.le.s32.totalorder 1, %s18
      %p142 = scmp.lt.s32.totalorder %s18, 3
      %p143 = pnand %p141, %p142
      %p144 = pneg %p143
      // Predicated region
      $region9: #{tpu_custom_call.1} parent=5 // pred_check
        _
      $region10: #{tpu_custom_call.1} parent=5 // pred_check_branch
        %146 = sbr.rel (%p143) target = $region12
      $region11: #{tpu_custom_call.1} parent=5 // pred_region
        %s147 = ssub.s32 %s18, 1
        // Predicated region
        $region13: #{tpu_custom_call.1} parent=11 // pred_check
          %p148 = pneg %p77
        $region14: #{tpu_custom_call.1} parent=11 // pred_check_branch
          %150 = sbr.rel (%p148) target = $region16
        $region15: #{tpu_custom_call.1} parent=11 // pred_region
          _
        $region16: #{tpu_custom_call.1} parent=11 // pred_fallthru
          _
      $region12: #{tpu_custom_call.1} parent=5 // pred_fallthru
        _
      %p151 = scmp.lt.s32.totalorder %s18, 2
      // Predicated region
      $region17: #{tpu_custom_call.1} parent=5 // pred_check
        %p152 = pneg %p151
      $region18: #{tpu_custom_call.1} parent=5 // pred_check_branch
        %154 = sbr.rel (%p152) target = $region20
      $region19: #{tpu_custom_call.1} parent=5 // pred_region
        // Predicated region
        $region21: #{tpu_custom_call.1} parent=19 // pred_check
          %p155 = pneg %p50
        $region22: #{tpu_custom_call.1} parent=19 // pred_check_branch
          %157 = sbr.rel (%p155) target = $region24
        $region23: #{tpu_custom_call.1} parent=19 // pred_region
          %s158 = sand.u32 %s40, 1
          %s159 = scalar_lea.sflag [#allocation3], %s158
          %s160 = sand.u32 %s40, 1
          %s161 = smul.addr %s160, 64
          %s162 = scalar_lea.vmem [#allocation2], %s161
          %s163 = smul.u32 32, %s25
          %s165 = ssub.s32 1024, 1024
          %166 = vsyncadd %s159, %s165
          %s167 = smul.addr %s163, 32
          %s168 = scalar_lea.hbm %s0, %s167
          %s170 = sshll.u32 %s162, 4
          %s171 = int_to_ptr.vmem [resolvable:$true] %s170
          %173 = dma.hbm_to_vmem [thread:$0]  %s168, 1024, %s171, %s159
        $region24: #{tpu_custom_call.1} parent=19 // pred_fallthru
          _
        // Predicated region
        $region25: #{tpu_custom_call.1} parent=19 // pred_check
          %p174 = pneg %p99
        $region26: #{tpu_custom_call.1} parent=19 // pred_check_branch
          %176 = sbr.rel (%p174) target = $region28
        $region27: #{tpu_custom_call.1} parent=19 // pred_region
          %s177 = sand.u32 %s89, 1
          %s178 = scalar_lea.sflag [#allocation6], %s177
          %s179 = sand.u32 %s89, 1
          %s180 = smul.addr %s179, 256
          %s181 = scalar_lea.vmem [#allocation5], %s180
          %s182 = smul.u32 32, %s25
          %s184 = ssub.s32 4096, 4096
          %185 = vsyncadd %s178, %s184
          %s186 = smul.addr %s26, 64
          %s187 = sadd.s32 %s182, %s186
          %s188 = smul.addr %s187, 128
          %s189 = scalar_lea.hbm %s2, %s188
          %s191 = sshll.u32 %s181, 4
          %s192 = int_to_ptr.vmem [resolvable:$true] %s191
          %194 = dma.hbm_to_vmem [thread:$0]  %s189, 4096, %s192, %s178
        $region28: #{tpu_custom_call.1} parent=19 // pred_fallthru
          _
      $region20: #{tpu_custom_call.1} parent=5 // pred_fallthru
        _
      %p195 = scmp.le.s32.totalorder 1, %s18
      %p196 = scmp.lt.s32.totalorder %s18, 3
      %p197 = pnand %p195, %p196
      %p198 = pneg %p197
      // Predicated region
      $region29: #{tpu_custom_call.1} parent=5 // pred_check
        _
      $region30: #{tpu_custom_call.1} parent=5 // pred_check_branch
        %200 = sbr.rel (%p197) target = $region32
      $region31: #{tpu_custom_call.1} parent=5 // pred_region
        %s201 = ssub.s32 %s18, 1
        %s202 = sand.u32 %s43, 1
        %s203 = scalar_lea.sflag [#allocation3], %s202
        %s204 = sand.u32 %s43, 1
        %s205 = smul.addr %s204, 64
        %s206 = scalar_lea.vmem [#allocation2], %s205
        // Predicated region
        $region33: #{tpu_custom_call.1} parent=31 // pred_check
          %p207 = pneg %p56
        $region34: #{tpu_custom_call.1} parent=31 // pred_check_branch
          %209 = sbr.rel (%p207) target = $region36
        $region35: #{tpu_custom_call.1} parent=31 // pred_region
          %210 = dma.done %s203, 1024
        $region36: #{tpu_custom_call.1} parent=31 // pred_fallthru
          _
        %s211 = sand.u32 %s92, 1
        %s212 = scalar_lea.sflag [#allocation6], %s211
        %s213 = sand.u32 %s92, 1
        %s214 = smul.addr %s213, 256
        %s215 = scalar_lea.vmem [#allocation5], %s214
        // Predicated region
        $region37: #{tpu_custom_call.1} parent=31 // pred_check
          %p216 = pneg %p105
        $region38: #{tpu_custom_call.1} parent=31 // pred_check_branch
          %218 = sbr.rel (%p216) target = $region40
        $region39: #{tpu_custom_call.1} parent=31 // pred_region
          %219 = dma.done %s212, 4096
        $region40: #{tpu_custom_call.1} parent=31 // pred_fallthru
          _
        %s220 = sand.u32 %s43, 1
        %s221 = scalar_lea.sflag [#allocation3], %s220
        %s222 = sand.u32 %s43, 1
        %s223 = smul.addr %s222, 64
        %s224 = scalar_lea.vmem [#allocation2], %s223
        %p225 = pneg %p56
        %p226 = pneg %p53
        %p227 = pneg %p77
        %p228 = pneg %p74
        %s229 = sand.u32 %s92, 1
        %s230 = scalar_lea.sflag [#allocation6], %s229
        %s231 = sand.u32 %s92, 1
        %s232 = smul.addr %s231, 256
        %s233 = scalar_lea.vmem [#allocation5], %s232
        %p234 = pneg %p105
        %p235 = pneg %p102
        %p236 = pneg %p133
        %p237 = pneg %p130
        %s238 = sand.u32 %s120, 1
        %s239 = scalar_lea.sflag [#allocation4], %s238
        %s240 = sand.u32 %s120, 1
        %s241 = smul.addr %s240, 256
        %s242 = scalar_lea.vmem [#allocation7], %s241
        %s243 = smul.u32 32, %s27
        %s244 = smul.u32 32, %s27
        %s245 = smul.u32 32, %s27
        %s246 = smul.u32 %s28, 8
        %s247 = scalar_lea.vmem %s1, %s246
        %v248 = vld [vmem:[%s247] sm:$0xff]
        %v249 = vld [vmem:[%s206] ss:$2 sm:$0xff]
        %s250 = scalar_lea.vmem %s206, 16 [#allocation2]
        %v251 = vld [vmem:[%s250] ss:$2 sm:$0xff]
        %s252 = scalar_lea.vmem %s206, 32 [#allocation2]
        %v253 = vld [vmem:[%s252] ss:$2 sm:$0xff]
        %s254 = scalar_lea.vmem %s206, 48 [#allocation2]
        %v255 = vld [vmem:[%s254] ss:$2 sm:$0xff]
        %s256 = scalar_lea.vmem %s206, 1 [#allocation2]
        %v257 = vld [vmem:[%s256] ss:$2 sm:$0xff]
        %s258 = scalar_lea.vmem %s206, 17 [#allocation2]
        %v259 = vld [vmem:[%s258] ss:$2 sm:$0xff]
        %s260 = scalar_lea.vmem %s206, 33 [#allocation2]
        %v261 = vld [vmem:[%s260] ss:$2 sm:$0xff]
        %s262 = scalar_lea.vmem %s206, 49 [#allocation2]
        %v263 = vld [vmem:[%s262] ss:$2 sm:$0xff]
        %v264 = vlaneseq
        %v265 = vshrl.u32 %v264, 7
        %v266 = vsub.s32 0, %v265
        %v267 = vrot.slane %v249, %v266
        %v268 = vlaneseq
        %v269 = vshrl.u32 %v268, 7
        %v270 = vsub.s32 1, %v269
        %v271 = vrot.slane %v249, %v270
        %v272 = vlaneseq
        %v273 = vshrl.u32 %v272, 7
        %v274 = vsub.s32 2, %v273
        %v275 = vrot.slane %v249, %v274
        %v276 = vlaneseq
        %v277 = vshrl.u32 %v276, 7
        %v278 = vsub.s32 3, %v277
        %v279 = vrot.slane %v249, %v278
        %v280 = vlaneseq
        %v281 = vshrl.u32 %v280, 7
        %v282 = vsub.s32 4, %v281
        %v283 = vrot.slane %v249, %v282
        %v284 = vlaneseq
        %v285 = vshrl.u32 %v284, 7
        %v286 = vsub.s32 5, %v285
        %v287 = vrot.slane %v249, %v286
        %v288 = vlaneseq
        %v289 = vshrl.u32 %v288, 7
        %v290 = vsub.s32 6, %v289
        %v291 = vrot.slane %v249, %v290
        %v292 = vlaneseq
        %v293 = vshrl.u32 %v292, 7
        %v294 = vsub.s32 7, %v293
        %v295 = vrot.slane %v249, %v294
        %v296 = vlaneseq
        %v297 = vshrl.u32 %v296, 7
        %v298 = vsub.s32 0, %v297
        %v299 = vrot.slane %v251, %v298
        %v300 = vlaneseq
        %v301 = vshrl.u32 %v300, 7
        %v302 = vsub.s32 1, %v301
        %v303 = vrot.slane %v251, %v302
        %v304 = vlaneseq
        %v305 = vshrl.u32 %v304, 7
        %v306 = vsub.s32 2, %v305
        %v307 = vrot.slane %v251, %v306
        %v308 = vlaneseq
        %v309 = vshrl.u32 %v308, 7
        %v310 = vsub.s32 3, %v309
        %v311 = vrot.slane %v251, %v310
        %v312 = vlaneseq
        %v313 = vshrl.u32 %v312, 7
        %v314 = vsub.s32 4, %v313
        %v315 = vrot.slane %v251, %v314
        %v316 = vlaneseq
        %v317 = vshrl.u32 %v316, 7
        %v318 = vsub.s32 5, %v317
        %v319 = vrot.slane %v251, %v318
        %v320 = vlaneseq
        %v321 = vshrl.u32 %v320, 7
        %v322 = vsub.s32 6, %v321
        %v323 = vrot.slane %v251, %v322
        %v324 = vlaneseq
        %v325 = vshrl.u32 %v324, 7
        %v326 = vsub.s32 7, %v325
        %v327 = vrot.slane %v251, %v326
        %v328 = vlaneseq
        %v329 = vshrl.u32 %v328, 7
        %v330 = vsub.s32 0, %v329
        %v331 = vrot.slane %v253, %v330
        %v332 = vlaneseq
        %v333 = vshrl.u32 %v332, 7
        %v334 = vsub.s32 1, %v333
        %v335 = vrot.slane %v253, %v334
        %v336 = vlaneseq
        %v337 = vshrl.u32 %v336, 7
        %v338 = vsub.s32 2, %v337
        %v339 = vrot.slane %v253, %v338
        %v340 = vlaneseq
        %v341 = vshrl.u32 %v340, 7
        %v342 = vsub.s32 3, %v341
        %v343 = vrot.slane %v253, %v342
        %v344 = vlaneseq
        %v345 = vshrl.u32 %v344, 7
        %v346 = vsub.s32 4, %v345
        %v347 = vrot.slane %v253, %v346
        %v348 = vlaneseq
        %v349 = vshrl.u32 %v348, 7
        %v350 = vsub.s32 5, %v349
        %v351 = vrot.slane %v253, %v350
        %v352 = vlaneseq
        %v353 = vshrl.u32 %v352, 7
        %v354 = vsub.s32 6, %v353
        %v355 = vrot.slane %v253, %v354
        %v356 = vlaneseq
        %v357 = vshrl.u32 %v356, 7
        %v358 = vsub.s32 7, %v357
        %v359 = vrot.slane %v253, %v358
        %v360 = vlaneseq
        %v361 = vshrl.u32 %v360, 7
        %v362 = vsub.s32 0, %v361
        %v363 = vrot.slane %v255, %v362
        %v364 = vlaneseq
        %v365 = vshrl.u32 %v364, 7
        %v366 = vsub.s32 1, %v365
        %v367 = vrot.slane %v255, %v366
        %v368 = vlaneseq
        %v369 = vshrl.u32 %v368, 7
        %v370 = vsub.s32 2, %v369
        %v371 = vrot.slane %v255, %v370
        %v372 = vlaneseq
        %v373 = vshrl.u32 %v372, 7
        %v374 = vsub.s32 3, %v373
        %v375 = vrot.slane %v255, %v374
        %v376 = vlaneseq
        %v377 = vshrl.u32 %v376, 7
        %v378 = vsub.s32 4, %v377
        %v379 = vrot.slane %v255, %v378
        %v380 = vlaneseq
        %v381 = vshrl.u32 %v380, 7
        %v382 = vsub.s32 5, %v381
        %v383 = vrot.slane %v255, %v382
        %v384 = vlaneseq
        %v385 = vshrl.u32 %v384, 7
        %v386 = vsub.s32 6, %v385
        %v387 = vrot.slane %v255, %v386
        %v388 = vlaneseq
        %v389 = vshrl.u32 %v388, 7
        %v390 = vsub.s32 7, %v389
        %v391 = vrot.slane %v255, %v390
        %392 = vset.pattern.permute.xlu0 0
        %393 = vperm.xlu0 %392, %v248
        %v394 = vpop.permute.xlu0 %393
        %v395 = vsub.s32 %v267, %v394
        %v396 = vsub.s32 %v271, %v394
        %v397 = vsub.s32 %v275, %v394
        %v398 = vsub.s32 %v279, %v394
        %v399 = vsub.s32 %v283, %v394
        %v400 = vsub.s32 %v287, %v394
        %v401 = vsub.s32 %v291, %v394
        %v402 = vsub.s32 %v295, %v394
        %v403 = vsub.s32 %v299, %v394
        %v404 = vsub.s32 %v303, %v394
        %v405 = vsub.s32 %v307, %v394
        %v406 = vsub.s32 %v311, %v394
        %v407 = vsub.s32 %v315, %v394
        %v408 = vsub.s32 %v319, %v394
        %v409 = vsub.s32 %v323, %v394
        %v410 = vsub.s32 %v327, %v394
        %v411 = vsub.s32 %v331, %v394
        %v412 = vsub.s32 %v335, %v394
        %v413 = vsub.s32 %v339, %v394
        %v414 = vsub.s32 %v343, %v394
        %v415 = vsub.s32 %v347, %v394
        %v416 = vsub.s32 %v351, %v394
        %v417 = vsub.s32 %v355, %v394
        %v418 = vsub.s32 %v359, %v394
        %v419 = vsub.s32 %v363, %v394
        %v420 = vsub.s32 %v367, %v394
        %v421 = vsub.s32 %v371, %v394
        %v422 = vsub.s32 %v375, %v394
        %v423 = vsub.s32 %v379, %v394
        %v424 = vsub.s32 %v383, %v394
        %v425 = vsub.s32 %v387, %v394
        %v426 = vsub.s32 %v391, %v394
        %427 = vset.pattern.permute.xlu0 1
        %428 = vperm.xlu0 %427, %v248
        %v429 = vpop.permute.xlu0 %428
        %vm430 = vcmp.lt.u32.totalorder %v395, %v429
        %vm431 = vcmp.lt.u32.totalorder %v396, %v429
        %vm432 = vcmp.lt.u32.totalorder %v397, %v429
        %vm433 = vcmp.lt.u32.totalorder %v398, %v429
        %vm434 = vcmp.lt.u32.totalorder %v399, %v429
        %vm435 = vcmp.lt.u32.totalorder %v400, %v429
        %vm436 = vcmp.lt.u32.totalorder %v401, %v429
        %vm437 = vcmp.lt.u32.totalorder %v402, %v429
        %vm438 = vcmp.lt.u32.totalorder %v403, %v429
        %vm439 = vcmp.lt.u32.totalorder %v404, %v429
        %vm440 = vcmp.lt.u32.totalorder %v405, %v429
        %vm441 = vcmp.lt.u32.totalorder %v406, %v429
        %vm442 = vcmp.lt.u32.totalorder %v407, %v429
        %vm443 = vcmp.lt.u32.totalorder %v408, %v429
        %vm444 = vcmp.lt.u32.totalorder %v409, %v429
        %vm445 = vcmp.lt.u32.totalorder %v410, %v429
        %vm446 = vcmp.lt.u32.totalorder %v411, %v429
        %vm447 = vcmp.lt.u32.totalorder %v412, %v429
        %vm448 = vcmp.lt.u32.totalorder %v413, %v429
        %vm449 = vcmp.lt.u32.totalorder %v414, %v429
        %vm450 = vcmp.lt.u32.totalorder %v415, %v429
        %vm451 = vcmp.lt.u32.totalorder %v416, %v429
        %vm452 = vcmp.lt.u32.totalorder %v417, %v429
        %vm453 = vcmp.lt.u32.totalorder %v418, %v429
        %vm454 = vcmp.lt.u32.totalorder %v419, %v429
        %vm455 = vcmp.lt.u32.totalorder %v420, %v429
        %vm456 = vcmp.lt.u32.totalorder %v421, %v429
        %vm457 = vcmp.lt.u32.totalorder %v422, %v429
        %vm458 = vcmp.lt.u32.totalorder %v423, %v429
        %vm459 = vcmp.lt.u32.totalorder %v424, %v429
        %vm460 = vcmp.lt.u32.totalorder %v425, %v429
        %vm461 = vcmp.lt.u32.totalorder %v426, %v429
        %v462 = vlaneseq
        %v463 = vshrl.u32 %v462, 7
        %v464 = vsub.s32 0, %v463
        %v465 = vrot.slane %v257, %v464
        %v466 = vlaneseq
        %v467 = vshrl.u32 %v466, 7
        %v468 = vsub.s32 1, %v467
        %v469 = vrot.slane %v257, %v468
        %v470 = vlaneseq
        %v471 = vshrl.u32 %v470, 7
        %v472 = vsub.s32 2, %v471
        %v473 = vrot.slane %v257, %v472
        %v474 = vlaneseq
        %v475 = vshrl.u32 %v474, 7
        %v476 = vsub.s32 3, %v475
        %v477 = vrot.slane %v257, %v476
        %v478 = vlaneseq
        %v479 = vshrl.u32 %v478, 7
        %v480 = vsub.s32 4, %v479
        %v481 = vrot.slane %v257, %v480
        %v482 = vlaneseq
        %v483 = vshrl.u32 %v482, 7
        %v484 = vsub.s32 5, %v483
        %v485 = vrot.slane %v257, %v484
        %v486 = vlaneseq
        %v487 = vshrl.u32 %v486, 7
        %v488 = vsub.s32 6, %v487
        %v489 = vrot.slane %v257, %v488
        %v490 = vlaneseq
        %v491 = vshrl.u32 %v490, 7
        %v492 = vsub.s32 7, %v491
        %v493 = vrot.slane %v257, %v492
        %v494 = vlaneseq
        %v495 = vshrl.u32 %v494, 7
        %v496 = vsub.s32 0, %v495
        %v497 = vrot.slane %v259, %v496
        %v498 = vlaneseq
        %v499 = vshrl.u32 %v498, 7
        %v500 = vsub.s32 1, %v499
        %v501 = vrot.slane %v259, %v500
        %v502 = vlaneseq
        %v503 = vshrl.u32 %v502, 7
        %v504 = vsub.s32 2, %v503
        %v505 = vrot.slane %v259, %v504
        %v506 = vlaneseq
        %v507 = vshrl.u32 %v506, 7
        %v508 = vsub.s32 3, %v507
        %v509 = vrot.slane %v259, %v508
        %v510 = vlaneseq
        %v511 = vshrl.u32 %v510, 7
        %v512 = vsub.s32 4, %v511
        %v513 = vrot.slane %v259, %v512
        %v514 = vlaneseq
        %v515 = vshrl.u32 %v514, 7
        %v516 = vsub.s32 5, %v515
        %v517 = vrot.slane %v259, %v516
        %v518 = vlaneseq
        %v519 = vshrl.u32 %v518, 7
        %v520 = vsub.s32 6, %v519
        %v521 = vrot.slane %v259, %v520
        %v522 = vlaneseq
        %v523 = vshrl.u32 %v522, 7
        %v524 = vsub.s32 7, %v523
        %v525 = vrot.slane %v259, %v524
        %v526 = vlaneseq
        %v527 = vshrl.u32 %v526, 7
        %v528 = vsub.s32 0, %v527
        %v529 = vrot.slane %v261, %v528
        %v530 = vlaneseq
        %v531 = vshrl.u32 %v530, 7
        %v532 = vsub.s32 1, %v531
        %v533 = vrot.slane %v261, %v532
        %v534 = vlaneseq
        %v535 = vshrl.u32 %v534, 7
        %v536 = vsub.s32 2, %v535
        %v537 = vrot.slane %v261, %v536
        %v538 = vlaneseq
        %v539 = vshrl.u32 %v538, 7
        %v540 = vsub.s32 3, %v539
        %v541 = vrot.slane %v261, %v540
        %v542 = vlaneseq
        %v543 = vshrl.u32 %v542, 7
        %v544 = vsub.s32 4, %v543
        %v545 = vrot.slane %v261, %v544
        %v546 = vlaneseq
        %v547 = vshrl.u32 %v546, 7
        %v548 = vsub.s32 5, %v547
        %v549 = vrot.slane %v261, %v548
        %v550 = vlaneseq
        %v551 = vshrl.u32 %v550, 7
        %v552 = vsub.s32 6, %v551
        %v553 = vrot.slane %v261, %v552
        %v554 = vlaneseq
        %v555 = vshrl.u32 %v554, 7
        %v556 = vsub.s32 7, %v555
        %v557 = vrot.slane %v261, %v556
        %v558 = vlaneseq
        %v559 = vshrl.u32 %v558, 7
        %v560 = vsub.s32 0, %v559
        %v561 = vrot.slane %v263, %v560
        %v562 = vlaneseq
        %v563 = vshrl.u32 %v562, 7
        %v564 = vsub.s32 1, %v563
        %v565 = vrot.slane %v263, %v564
        %v566 = vlaneseq
        %v567 = vshrl.u32 %v566, 7
        %v568 = vsub.s32 2, %v567
        %v569 = vrot.slane %v263, %v568
        %v570 = vlaneseq
        %v571 = vshrl.u32 %v570, 7
        %v572 = vsub.s32 3, %v571
        %v573 = vrot.slane %v263, %v572
        %v574 = vlaneseq
        %v575 = vshrl.u32 %v574, 7
        %v576 = vsub.s32 4, %v575
        %v577 = vrot.slane %v263, %v576
        %v578 = vlaneseq
        %v579 = vshrl.u32 %v578, 7
        %v580 = vsub.s32 5, %v579
        %v581 = vrot.slane %v263, %v580
        %v582 = vlaneseq
        %v583 = vshrl.u32 %v582, 7
        %v584 = vsub.s32 6, %v583
        %v585 = vrot.slane %v263, %v584
        %v586 = vlaneseq
        %v587 = vshrl.u32 %v586, 7
        %v588 = vsub.s32 7, %v587
        %v589 = vrot.slane %v263, %v588
        %590 = vset.pattern.permute.xlu0 2
        %591 = vperm.xlu0 %590, %v248
        %v592 = vpop.permute.xlu0 %591
        %v593 = vsub.s32 %v465, %v592
        %v594 = vsub.s32 %v469, %v592
        %v595 = vsub.s32 %v473, %v592
        %v596 = vsub.s32 %v477, %v592
        %v597 = vsub.s32 %v481, %v592
        %v598 = vsub.s32 %v485, %v592
        %v599 = vsub.s32 %v489, %v592
        %v600 = vsub.s32 %v493, %v592
        %v601 = vsub.s32 %v497, %v592
        %v602 = vsub.s32 %v501, %v592
        %v603 = vsub.s32 %v505, %v592
        %v604 = vsub.s32 %v509, %v592
        %v605 = vsub.s32 %v513, %v592
        %v606 = vsub.s32 %v517, %v592
        %v607 = vsub.s32 %v521, %v592
        %v608 = vsub.s32 %v525, %v592
        %v609 = vsub.s32 %v529, %v592
        %v610 = vsub.s32 %v533, %v592
        %v611 = vsub.s32 %v537, %v592
        %v612 = vsub.s32 %v541, %v592
        %v613 = vsub.s32 %v545, %v592
        %v614 = vsub.s32 %v549, %v592
        %v615 = vsub.s32 %v553, %v592
        %v616 = vsub.s32 %v557, %v592
        %v617 = vsub.s32 %v561, %v592
        %v618 = vsub.s32 %v565, %v592
        %v619 = vsub.s32 %v569, %v592
        %v620 = vsub.s32 %v573, %v592
        %v621 = vsub.s32 %v577, %v592
        %v622 = vsub.s32 %v581, %v592
        %v623 = vsub.s32 %v585, %v592
        %v624 = vsub.s32 %v589, %v592
        %625 = vset.pattern.permute.xlu0 3
        %626 = vperm.xlu0 %625, %v248
        %v627 = vpop.permute.xlu0 %626
        %vm628 = vcmp.lt.u32.totalorder %v593, %v627
        %vm629 = vcmp.lt.u32.totalorder %v594, %v627
        %vm630 = vcmp.lt.u32.totalorder %v595, %v627
        %vm631 = vcmp.lt.u32.totalorder %v596, %v627
        %vm632 = vcmp.lt.u32.totalorder %v597, %v627
        %vm633 = vcmp.lt.u32.totalorder %v598, %v627
        %vm634 = vcmp.lt.u32.totalorder %v599, %v627
        %vm635 = vcmp.lt.u32.totalorder %v600, %v627
        %vm636 = vcmp.lt.u32.totalorder %v601, %v627
        %vm637 = vcmp.lt.u32.totalorder %v602, %v627
        %vm638 = vcmp.lt.u32.totalorder %v603, %v627
        %vm639 = vcmp.lt.u32.totalorder %v604, %v627
        %vm640 = vcmp.lt.u32.totalorder %v605, %v627
        %vm641 = vcmp.lt.u32.totalorder %v606, %v627
        %vm642 = vcmp.lt.u32.totalorder %v607, %v627
        %vm643 = vcmp.lt.u32.totalorder %v608, %v627
        %vm644 = vcmp.lt.u32.totalorder %v609, %v627
        %vm645 = vcmp.lt.u32.totalorder %v610, %v627
        %vm646 = vcmp.lt.u32.totalorder %v611, %v627
        %vm647 = vcmp.lt.u32.totalorder %v612, %v627
        %vm648 = vcmp.lt.u32.totalorder %v613, %v627
        %vm649 = vcmp.lt.u32.totalorder %v614, %v627
        %vm650 = vcmp.lt.u32.totalorder %v615, %v627
        %vm651 = vcmp.lt.u32.totalorder %v616, %v627
        %vm652 = vcmp.lt.u32.totalorder %v617, %v627
        %vm653 = vcmp.lt.u32.totalorder %v618, %v627
        %vm654 = vcmp.lt.u32.totalorder %v619, %v627
        %vm655 = vcmp.lt.u32.totalorder %v620, %v627
        %vm656 = vcmp.lt.u32.totalorder %v621, %v627
        %vm657 = vcmp.lt.u32.totalorder %v622, %v627
        %vm658 = vcmp.lt.u32.totalorder %v623, %v627
        %vm659 = vcmp.lt.u32.totalorder %v624, %v627
        %vm660 = vmor %vm430, %vm628
        %vm661 = vmor %vm431, %vm629
        %vm662 = vmor %vm432, %vm630
        %vm663 = vmor %vm433, %vm631
        %vm664 = vmor %vm434, %vm632
        %vm665 = vmor %vm435, %vm633
        %vm666 = vmor %vm436, %vm634
        %vm667 = vmor %vm437, %vm635
        %vm668 = vmor %vm438, %vm636
        %vm669 = vmor %vm439, %vm637
        %vm670 = vmor %vm440, %vm638
        %vm671 = vmor %vm441, %vm639
        %vm672 = vmor %vm442, %vm640
        %vm673 = vmor %vm443, %vm641
        %vm674 = vmor %vm444, %vm642
        %vm675 = vmor %vm445, %vm643
        %vm676 = vmor %vm446, %vm644
        %vm677 = vmor %vm447, %vm645
        %vm678 = vmor %vm448, %vm646
        %vm679 = vmor %vm449, %vm647
        %vm680 = vmor %vm450, %vm648
        %vm681 = vmor %vm451, %vm649
        %vm682 = vmor %vm452, %vm650
        %vm683 = vmor %vm453, %vm651
        %vm684 = vmor %vm454, %vm652
        %vm685 = vmor %vm455, %vm653
        %vm686 = vmor %vm456, %vm654
        %vm687 = vmor %vm457, %vm655
        %vm688 = vmor %vm458, %vm656
        %vm689 = vmor %vm459, %vm657
        %vm690 = vmor %vm460, %vm658
        %vm691 = vmor %vm461, %vm659
        %v692 = vld [vmem:[%s215] sm:$0xff]
        %v693 = vld [vmem:[%s215 + $0x8] sm:$0xff]
        %v694 = vld [vmem:[%s215 + $0x10] sm:$0xff]
        %v695 = vld [vmem:[%s215 + $0x18] sm:$0xff]
        %v696 = vld [vmem:[%s215 + $0x20] sm:$0xff]
        %v697 = vld [vmem:[%s215 + $0x28] sm:$0xff]
        %v698 = vld [vmem:[%s215 + $0x30] sm:$0xff]
        %v699 = vld [vmem:[%s215 + $0x38] sm:$0xff]
        %v700 = vld [vmem:[%s215 + $0x40] sm:$0xff]
        %v701 = vld [vmem:[%s215 + $0x48] sm:$0xff]
        %v702 = vld [vmem:[%s215 + $0x50] sm:$0xff]
        %v703 = vld [vmem:[%s215 + $0x58] sm:$0xff]
        %v704 = vld [vmem:[%s215 + $0x60] sm:$0xff]
        %v705 = vld [vmem:[%s215 + $0x68] sm:$0xff]
        %v706 = vld [vmem:[%s215 + $0x70] sm:$0xff]
        %v707 = vld [vmem:[%s215 + $0x78] sm:$0xff]
        %v708 = vld [vmem:[%s215 + $0x80] sm:$0xff]
        %v709 = vld [vmem:[%s215 + $0x88] sm:$0xff]
        %v710 = vld [vmem:[%s215 + $0x90] sm:$0xff]
        %v711 = vld [vmem:[%s215 + $0x98] sm:$0xff]
        %v712 = vld [vmem:[%s215 + $0xa0] sm:$0xff]
        %v713 = vld [vmem:[%s215 + $0xa8] sm:$0xff]
        %v714 = vld [vmem:[%s215 + $0xb0] sm:$0xff]
        %v715 = vld [vmem:[%s215 + $0xb8] sm:$0xff]
        %v716 = vld [vmem:[%s215 + $0xc0] sm:$0xff]
        %v717 = vld [vmem:[%s215 + $0xc8] sm:$0xff]
        %v718 = vld [vmem:[%s215 + $0xd0] sm:$0xff]
        %v719 = vld [vmem:[%s215 + $0xd8] sm:$0xff]
        %v720 = vld [vmem:[%s215 + $0xe0] sm:$0xff]
        %v721 = vld [vmem:[%s215 + $0xe8] sm:$0xff]
        %v722 = vld [vmem:[%s215 + $0xf0] sm:$0xff]
        %v723 = vld [vmem:[%s215 + $0xf8] sm:$0xff]
        %v724 = vsel %vm660, 0.0, %v692
        %v725 = vsel %vm661, 0.0, %v693
        %v726 = vsel %vm662, 0.0, %v694
        %v727 = vsel %vm663, 0.0, %v695
        %v728 = vsel %vm664, 0.0, %v696
        %v729 = vsel %vm665, 0.0, %v697
        %v730 = vsel %vm666, 0.0, %v698
        %v731 = vsel %vm667, 0.0, %v699
        %v732 = vsel %vm668, 0.0, %v700
        %v733 = vsel %vm669, 0.0, %v701
        %v734 = vsel %vm670, 0.0, %v702
        %v735 = vsel %vm671, 0.0, %v703
        %v736 = vsel %vm672, 0.0, %v704
        %v737 = vsel %vm673, 0.0, %v705
        %v738 = vsel %vm674, 0.0, %v706
        %v739 = vsel %vm675, 0.0, %v707
        %v740 = vsel %vm676, 0.0, %v708
        %v741 = vsel %vm677, 0.0, %v709
        %v742 = vsel %vm678, 0.0, %v710
        %v743 = vsel %vm679, 0.0, %v711
        %v744 = vsel %vm680, 0.0, %v712
        %v745 = vsel %vm681, 0.0, %v713
        %v746 = vsel %vm682, 0.0, %v714
        %v747 = vsel %vm683, 0.0, %v715
        %v748 = vsel %vm684, 0.0, %v716
        %v749 = vsel %vm685, 0.0, %v717
        %v750 = vsel %vm686, 0.0, %v718
        %v751 = vsel %vm687, 0.0, %v719
        %v752 = vsel %vm688, 0.0, %v720
        %v753 = vsel %vm689, 0.0, %v721
        %v754 = vsel %vm690, 0.0, %v722
        %v755 = vsel %vm691, 0.0, %v723
        %756 = vst [vmem:[%s242] sm:$0xff] %v724
        %757 = vst [vmem:[%s242 + $0x8] sm:$0xff] %v725
        %758 = vst [vmem:[%s242 + $0x10] sm:$0xff] %v726
        %759 = vst [vmem:[%s242 + $0x18] sm:$0xff] %v727
        %760 = vst [vmem:[%s242 + $0x20] sm:$0xff] %v728
        %761 = vst [vmem:[%s242 + $0x28] sm:$0xff] %v729
        %762 = vst [vmem:[%s242 + $0x30] sm:$0xff] %v730
        %763 = vst [vmem:[%s242 + $0x38] sm:$0xff] %v731
        %764 = vst [vmem:[%s242 + $0x40] sm:$0xff] %v732
        %765 = vst [vmem:[%s242 + $0x48] sm:$0xff] %v733
        %766 = vst [vmem:[%s242 + $0x50] sm:$0xff] %v734
        %767 = vst [vmem:[%s242 + $0x58] sm:$0xff] %v735
        %768 = vst [vmem:[%s242 + $0x60] sm:$0xff] %v736
        %769 = vst [vmem:[%s242 + $0x68] sm:$0xff] %v737
        %770 = vst [vmem:[%s242 + $0x70] sm:$0xff] %v738
        %771 = vst [vmem:[%s242 + $0x78] sm:$0xff] %v739
        %772 = vst [vmem:[%s242 + $0x80] sm:$0xff] %v740
        %773 = vst [vmem:[%s242 + $0x88] sm:$0xff] %v741
        %774 = vst [vmem:[%s242 + $0x90] sm:$0xff] %v742
        %775 = vst [vmem:[%s242 + $0x98] sm:$0xff] %v743
        %776 = vst [vmem:[%s242 + $0xa0] sm:$0xff] %v744
        %777 = vst [vmem:[%s242 + $0xa8] sm:$0xff] %v745
        %778 = vst [vmem:[%s242 + $0xb0] sm:$0xff] %v746
        %779 = vst [vmem:[%s242 + $0xb8] sm:$0xff] %v747
        %780 = vst [vmem:[%s242 + $0xc0] sm:$0xff] %v748
        %781 = vst [vmem:[%s242 + $0xc8] sm:$0xff] %v749
        %782 = vst [vmem:[%s242 + $0xd0] sm:$0xff] %v750
        %783 = vst [vmem:[%s242 + $0xd8] sm:$0xff] %v751
        %784 = vst [vmem:[%s242 + $0xe0] sm:$0xff] %v752
        %785 = vst [vmem:[%s242 + $0xe8] sm:$0xff] %v753
        %786 = vst [vmem:[%s242 + $0xf0] sm:$0xff] %v754
        %787 = vst [vmem:[%s242 + $0xf8] sm:$0xff] %v755
        %s788 = sand.u32 %s120, 1
        %s789 = scalar_lea.sflag [#allocation4], %s788
        %s790 = sand.u32 %s120, 1
        %s791 = smul.addr %s790, 256
        %s792 = scalar_lea.vmem [#allocation7], %s791
        // Predicated region
        $region41: #{tpu_custom_call.1} parent=31 // pred_check
          %p793 = pneg %p130
        $region42: #{tpu_custom_call.1} parent=31 // pred_check_branch
          %795 = sbr.rel (%p793) target = $region44
        $region43: #{tpu_custom_call.1} parent=31 // pred_region
          %s796 = smul.u32 32, %s27
          %s798 = ssub.s32 4096, 4096
          %799 = vsyncadd %s789, %s798
          %s800 = smul.addr %s28, 64
          %s801 = sadd.s32 %s796, %s800
          %s802 = smul.addr %s801, 128
          %s803 = scalar_lea.hbm %s3, %s802
          %s805 = sshll.u32 %s792, 4
          %s806 = int_to_ptr.vmem [resolvable:$true] %s805
          %808 = dma.vmem_to_hbm [thread:$0]  %s806, 4096, %s803, %s789
        $region44: #{tpu_custom_call.1} parent=31 // pred_fallthru
          _
      $region32: #{tpu_custom_call.1} parent=5 // pred_fallthru
        _
      %p809 = scmp.le.s32.totalorder 2, %s18
      // Predicated region
      $region45: #{tpu_custom_call.1} parent=5 // pred_check
        %p810 = pneg %p809
      $region46: #{tpu_custom_call.1} parent=5 // pred_check_branch
        %812 = sbr.rel (%p810) target = $region48
      $region47: #{tpu_custom_call.1} parent=5 // pred_region
        %s813 = ssub.s32 %s18, 2
        // Predicated region
        $region49: #{tpu_custom_call.1} parent=47 // pred_check
          %p814 = pneg %p136
        $region50: #{tpu_custom_call.1} parent=47 // pred_check_branch
          %816 = sbr.rel (%p814) target = $region52
        $region51: #{tpu_custom_call.1} parent=47 // pred_region
          %s817 = sand.u32 %s121, 1
          %s818 = scalar_lea.sflag [#allocation4], %s817
          %s819 = sand.u32 %s121, 1
          %s820 = smul.addr %s819, 256
          %s821 = scalar_lea.vmem [#allocation7], %s820
          %822 = dma.done %s818, 4096
        $region52: #{tpu_custom_call.1} parent=47 // pred_fallthru
          _
      $region48: #{tpu_custom_call.1} parent=5 // pred_fallthru
        _
    $region6: #{tpu_custom_call.1} parent=1 // loop_footer
      %s22 = sadd.s32 1, %s18
    $region7: #{tpu_custom_call.1} parent=1 // loop_footer_branch
      %17 = sbr.rel target = $region3
    $region8: #{tpu_custom_call.1} parent=1 // loop_exit
      _
    %823 = vsyncpa [#allocation3], 1
    %s824 = scalar_lea.sflag [#allocation3], 1
    %825 = vsyncpa %s824, 1
    %826 = vsyncpa [#allocation6], 1
    %s827 = scalar_lea.sflag [#allocation6], 1
    %828 = vsyncpa %s827, 1
    %829 = vsyncpa [#allocation4], 1
    %s830 = scalar_lea.sflag [#allocation4], 1
    %831 = vsyncpa %s830, 1

</llo_original>
